<compile_context>
chip_gen: v6e
topology: v6e:2x2x1
jax: 0.10.0
libtpu: 0.0.40
codegen_flags: <defaults>
</compile_context>

<pallas_src>
import jax
import jax.numpy as jnp
from jax.experimental import pallas as pl
from jax.experimental.pallas import tpu as pltpu

B, IN, H, OUT = 256, 32, 128, 16
BN_EPS = 1e-5


def _fused_mlp_bn_kernel(x_ref, w1_ref, gamma_ref, beta_ref, w2_ref, b2_ref,
                         o_ref):
    # fc1 (bias omitted: exactly cancelled by BN mean-centering below).
    h = jnp.dot(x_ref[...], w1_ref[...],
                preferred_element_type=jnp.float32)            # [B, H] f32

    # bn1, training mode: batch statistics, biased variance, affine.
    # Single pass: sum(h) and sum(h*h) have no serial dependency between them.
    inv_b = 1.0 / h.shape[0]
    s1 = jnp.sum(h, axis=0, keepdims=True)                     # [1, H]
    s2 = jnp.sum(h * h, axis=0, keepdims=True)                 # [1, H]
    mean = s1 * inv_b
    var = s2 * inv_b - mean * mean                             # biased var, f32
    scale = gamma_ref[...] * jax.lax.rsqrt(var + BN_EPS)       # EUP rsqrt
    shift = beta_ref[...] - mean * scale
    # bn + relu fused into a single pass over h (only one (B,H) live copy).
    h_act = jnp.maximum(h * scale + shift, 0.0)

    # fc2: (B,H) @ (H,OUT) + b2 -> unpadded (B, OUT) store (masked 16 lanes).
    o_ref[...] = jnp.dot(h_act, w2_ref[...],
                         preferred_element_type=jnp.float32) + b2_ref[...]


def custom_model_forward(x, w1, gamma, beta, w2, b2):
    """Fused forward of the sequential inner model inside CustomModel.

    x:          [B, IN]   f32
    w1:         [IN, H]   f32  (fc1.weight pre-transposed once at prep time)
    gamma/beta: [1, H]    f32  (bn1.weight / bn1.bias)
    w2:         [H, OUT]  f32  (fc2.weight pre-transposed once at prep time)
    b2:         [1, OUT]  f32  (fc2.bias)
    returns:    [B, OUT]  f32

    fc1.bias is not an argument: with training-mode BatchNorm directly after
    fc1 it cancels exactly and is dropped for performance.
    """
    Bx = x.shape[0]
    out_dim = w2.shape[1]
    vmem = pl.BlockSpec(memory_space=pltpu.MemorySpace.VMEM)
    return pl.pallas_call(
        _fused_mlp_bn_kernel,
        out_shape=jax.ShapeDtypeStruct((Bx, out_dim), jnp.float32),
        in_specs=[vmem] * 6,
        out_specs=vmem,
    )(x, w1, gamma, beta, w2, b2)


def _reference(x, w1, b1, gamma, beta, w2, b2):
    # Full-precision reference of the PyTorch module (fc1 bias INCLUDED; it
    # must cancel against the kernel, which omits it).
    hp = jax.lax.Precision.HIGHEST
    h = jnp.dot(x, w1, precision=hp) + b1
    mean = jnp.mean(h, axis=0, keepdims=True)
    var = jnp.mean((h - mean) ** 2, axis=0, keepdims=True)
    h = (h - mean) * (gamma * jax.lax.rsqrt(var + BN_EPS)) + beta
    h = jnp.maximum(h, 0.0)
    return jnp.dot(h, w2, precision=hp) + b2


if __name__ == "__main__":
    key = jax.random.PRNGKey(0)
    kx, k1, k2, k3, k4, k5, k6 = jax.random.split(key, 7)

    # Deterministic parameters (shapes follow the inner nn.Sequential).
    x = jax.random.normal(kx, (B, IN), dtype=jnp.float32)
    w1 = jax.random.normal(k1, (IN, H), dtype=jnp.float32) * 0.1   # fc1.weight.T
    b1 = jax.random.normal(k2, (1, H), dtype=jnp.float32) * 0.1    # fc1.bias (ref only)
    gamma = 1.0 + 0.1 * jax.random.normal(k5, (1, H), dtype=jnp.float32)  # bn1.weight
    beta = 0.1 * jax.random.normal(k6, (1, H), dtype=jnp.float32)         # bn1.bias
    w2 = jax.random.normal(k3, (H, OUT), dtype=jnp.float32) * 0.1  # fc2.weight.T
    b2 = jax.random.normal(k4, (1, OUT), dtype=jnp.float32) * 0.1  # fc2.bias

    out = custom_model_forward(x, w1, gamma, beta, w2, b2)
    jax.block_until_ready(out)

    ref = _reference(x, w1, b1, gamma, beta, w2, b2)
    assert out.shape == (B, OUT)
    assert jnp.allclose(out, ref, atol=2e-3, rtol=2e-3), "mismatch vs reference"

    print("KERNEL_OK")
</pallas_src>

<mosaic_0001>
module attributes {stable_mosaic.version = 11 : i64} {
  func.func @_fused_mlp_bn_kernel(%arg0: memref<256x32xf32, #tpu.memory_space<vmem>>, %arg1: memref<32x128xf32, #tpu.memory_space<vmem>>, %arg2: memref<1x128xf32, #tpu.memory_space<vmem>>, %arg3: memref<1x128xf32, #tpu.memory_space<vmem>>, %arg4: memref<128x16xf32, #tpu.memory_space<vmem>>, %arg5: memref<1x16xf32, #tpu.memory_space<vmem>>, %arg6: memref<256x16xf32, #tpu.memory_space<vmem>>) attributes {dimension_semantics = [], scalar_prefetch = 0 : i64, scratch_operands = 0 : i64, tpu.core_type = #tpu.core_type<tc>} {
    %c0 = arith.constant 0 : index
    %c0_0 = arith.constant 0 : index
    %0 = vector.load %arg0[%c0, %c0_0] : memref<256x32xf32, #tpu.memory_space<vmem>>, vector<256x32xf32>
    %c0_1 = arith.constant 0 : index
    %c0_2 = arith.constant 0 : index
    %1 = vector.load %arg1[%c0_1, %c0_2] : memref<32x128xf32, #tpu.memory_space<vmem>>, vector<32x128xf32>
    %cst = arith.constant dense<0.000000e+00> : vector<256x128xf32>
    %2 = tpu.matmul %0, %1, %cst {dimension_numbers = #tpu.dot_dimension_numbers<[1], [0], [0], [1], [0, 0, 1, 1], [], []>} : vector<256x32xf32>, vector<32x128xf32>, vector<256x128xf32> -> vector<256x128xf32>
    %cst_3 = arith.constant dense<0.000000e+00> : vector<128xf32>
    %3 = vector.multi_reduction <add>, %2, %cst_3 [0] : vector<256x128xf32> to vector<128xf32>
    %4 = vector.shape_cast %3 : vector<128xf32> to vector<1x128xf32>
    %5 = arith.mulf %2, %2 : vector<256x128xf32>
    %cst_4 = arith.constant dense<0.000000e+00> : vector<128xf32>
    %6 = vector.multi_reduction <add>, %5, %cst_4 [0] : vector<256x128xf32> to vector<128xf32>
    %7 = vector.shape_cast %6 : vector<128xf32> to vector<1x128xf32>
    %cst_5 = arith.constant 3.906250e-03 : f32
    %8 = vector.broadcast %cst_5 : f32 to vector<1x128xf32>
    %9 = arith.mulf %4, %8 : vector<1x128xf32>
    %cst_6 = arith.constant 3.906250e-03 : f32
    %10 = vector.broadcast %cst_6 : f32 to vector<1x128xf32>
    %11 = arith.mulf %7, %10 : vector<1x128xf32>
    %12 = arith.mulf %9, %9 : vector<1x128xf32>
    %13 = arith.subf %11, %12 : vector<1x128xf32>
    %c0_7 = arith.constant 0 : index
    %c0_8 = arith.constant 0 : index
    %14 = vector.load %arg2[%c0_7, %c0_8] : memref<1x128xf32, #tpu.memory_space<vmem>>, vector<1x128xf32>
    %cst_9 = arith.constant 9.99999974E-6 : f32
    %15 = vector.broadcast %cst_9 : f32 to vector<1x128xf32>
    %16 = arith.addf %13, %15 : vector<1x128xf32>
    %17 = math.rsqrt %16 : vector<1x128xf32>
    %18 = arith.mulf %14, %17 : vector<1x128xf32>
    %c0_10 = arith.constant 0 : index
    %c0_11 = arith.constant 0 : index
    %19 = vector.load %arg3[%c0_10, %c0_11] : memref<1x128xf32, #tpu.memory_space<vmem>>, vector<1x128xf32>
    %20 = arith.mulf %9, %18 : vector<1x128xf32>
    %21 = arith.subf %19, %20 : vector<1x128xf32>
    %22 = vector.broadcast %18 : vector<1x128xf32> to vector<256x128xf32>
    %23 = arith.mulf %2, %22 : vector<256x128xf32>
    %24 = vector.broadcast %21 : vector<1x128xf32> to vector<256x128xf32>
    %25 = arith.addf %23, %24 : vector<256x128xf32>
    %cst_12 = arith.constant 0.000000e+00 : f32
    %26 = vector.broadcast %cst_12 : f32 to vector<256x128xf32>
    %27 = arith.maximumf %25, %26 : vector<256x128xf32>
    %c0_13 = arith.constant 0 : index
    %c0_14 = arith.constant 0 : index
    %28 = vector.load %arg4[%c0_13, %c0_14] : memref<128x16xf32, #tpu.memory_space<vmem>>, vector<128x16xf32>
    %cst_15 = arith.constant dense<0.000000e+00> : vector<256x16xf32>
    %29 = tpu.matmul %27, %28, %cst_15 {dimension_numbers = #tpu.dot_dimension_numbers<[1], [0], [0], [1], [0, 0, 1, 1], [], []>} : vector<256x128xf32>, vector<128x16xf32>, vector<256x16xf32> -> vector<256x16xf32>
    %c0_16 = arith.constant 0 : index
    %c0_17 = arith.constant 0 : index
    %30 = vector.load %arg5[%c0_16, %c0_17] : memref<1x16xf32, #tpu.memory_space<vmem>>, vector<1x16xf32>
    %31 = vector.broadcast %30 : vector<1x16xf32> to vector<256x16xf32>
    %32 = arith.addf %29, %31 : vector<256x16xf32>
    %c0_18 = arith.constant 0 : index
    %c0_19 = arith.constant 0 : index
    %33 = vector.load %arg6[%c0_18, %c0_19] : memref<256x16xf32, #tpu.memory_space<vmem>>, vector<256x16xf32>
    tpu.vector_store %arg6[%c0_18, %c0_19], %32 {strides = array<i32>} : memref<256x16xf32, #tpu.memory_space<vmem>>, vector<256x16xf32>,
    return
  }
}

</mosaic_0001>

<llo_original>
// kernel: tpu_custom_call.1
$region0: #{tpu_custom_call.1}
  #allocation0 [shape = 'u32[]', space=smem, size = 0x4, offset = 0x4, fixed_abs, tag = 'smem constant byte address 0x4 - core index']
  #allocation1 [shape = 'u32[144,128]{1,0:T(1,128)}', space=vmem, size = 0x12000, scoped, tag = 'internal scratch']
  %s0 = inlined_call_operand.vmem [shape: f32[256,32], index: 0, kind: input, shape index: {}]
  %s1 = inlined_call_operand.vmem [shape: f32[32,128], index: 1, kind: input, shape index: {}]
  %s2 = inlined_call_operand.vmem [shape: f32[1,128], index: 2, kind: input, shape index: {}]
  %s3 = inlined_call_operand.vmem [shape: f32[1,128], index: 3, kind: input, shape index: {}]
  %s4 = inlined_call_operand.vmem [shape: f32[128,16], index: 4, kind: input, shape index: {}]
  %s5 = inlined_call_operand.vmem [shape: f32[1,16], index: 5, kind: input, shape index: {}]
  %s6 = inlined_call_operand.vmem [shape: f32[256,16], index: 6, kind: output, shape index: {}]
  %s7 = sld [smem:[#allocation0]]
  $region34: #{tpu_custom_call.1} parent=0
    _
  %s9 = ssub.s32 1, %s7
  %s10 = scalar_select 0, %s9, %s7
  // Predicated region
  $region2: #{tpu_custom_call.1} parent=0 // pred_check
    _
  $region3: #{tpu_custom_call.1} parent=0 // pred_check_branch
    %12 = sbr.rel (0) target = $region5
  $region4: #{tpu_custom_call.1} parent=0 // pred_region
    _
  $region5: #{tpu_custom_call.1} parent=0 // pred_fallthru
    _
  // Predicated region
  $region6: #{tpu_custom_call.1} parent=0 // pred_check
    _
  $region7: #{tpu_custom_call.1} parent=0 // pred_check_branch
    %14 = sbr.rel (0) target = $region9
  $region8: #{tpu_custom_call.1} parent=0 // pred_region
    _
  $region9: #{tpu_custom_call.1} parent=0 // pred_fallthru
    _
  // Predicated region
  $region10: #{tpu_custom_call.1} parent=0 // pred_check
    _
  $region11: #{tpu_custom_call.1} parent=0 // pred_check_branch
    %16 = sbr.rel (0) target = $region13
  $region12: #{tpu_custom_call.1} parent=0 // pred_region
    _
  $region13: #{tpu_custom_call.1} parent=0 // pred_fallthru
    _
  // Predicated region
  $region14: #{tpu_custom_call.1} parent=0 // pred_check
    _
  $region15: #{tpu_custom_call.1} parent=0 // pred_check_branch
    %18 = sbr.rel (0) target = $region17
  $region16: #{tpu_custom_call.1} parent=0 // pred_region
    _
  $region17: #{tpu_custom_call.1} parent=0 // pred_fallthru
    _
  // Predicated region
  $region18: #{tpu_custom_call.1} parent=0 // pred_check
    _
  $region19: #{tpu_custom_call.1} parent=0 // pred_check_branch
    %20 = sbr.rel (0) target = $region21
  $region20: #{tpu_custom_call.1} parent=0 // pred_region
    _
  $region21: #{tpu_custom_call.1} parent=0 // pred_fallthru
    _
  // Predicated region
  $region22: #{tpu_custom_call.1} parent=0 // pred_check
    _
  $region23: #{tpu_custom_call.1} parent=0 // pred_check_branch
    %22 = sbr.rel (0) target = $region25
  $region24: #{tpu_custom_call.1} parent=0 // pred_region
    _
  $region25: #{tpu_custom_call.1} parent=0 // pred_fallthru
    _
  %v23 = vld [vmem:[%s0] sm:$0xff]
  %v24 = vld [vmem:[%s0 + $0x8] sm:$0xff]
  %v25 = vld [vmem:[%s0 + $0x10] sm:$0xff]
  %v26 = vld [vmem:[%s0 + $0x18] sm:$0xff]
  %v27 = vld [vmem:[%s0 + $0x20] sm:$0xff]
  %v28 = vld [vmem:[%s0 + $0x28] sm:$0xff]
  %v29 = vld [vmem:[%s0 + $0x30] sm:$0xff]
  %v30 = vld [vmem:[%s0 + $0x38] sm:$0xff]
  %v31 = vld [vmem:[%s0 + $0x40] sm:$0xff]
  %v32 = vld [vmem:[%s0 + $0x48] sm:$0xff]
  %v33 = vld [vmem:[%s0 + $0x50] sm:$0xff]
  %v34 = vld [vmem:[%s0 + $0x58] sm:$0xff]
  %v35 = vld [vmem:[%s0 + $0x60] sm:$0xff]
  %v36 = vld [vmem:[%s0 + $0x68] sm:$0xff]
  %v37 = vld [vmem:[%s0 + $0x70] sm:$0xff]
  %v38 = vld [vmem:[%s0 + $0x78] sm:$0xff]
  %v39 = vld [vmem:[%s0 + $0x80] sm:$0xff]
  %v40 = vld [vmem:[%s0 + $0x88] sm:$0xff]
  %v41 = vld [vmem:[%s0 + $0x90] sm:$0xff]
  %v42 = vld [vmem:[%s0 + $0x98] sm:$0xff]
  %v43 = vld [vmem:[%s0 + $0xa0] sm:$0xff]
  %v44 = vld [vmem:[%s0 + $0xa8] sm:$0xff]
  %v45 = vld [vmem:[%s0 + $0xb0] sm:$0xff]
  %v46 = vld [vmem:[%s0 + $0xb8] sm:$0xff]
  %v47 = vld [vmem:[%s0 + $0xc0] sm:$0xff]
  %v48 = vld [vmem:[%s0 + $0xc8] sm:$0xff]
  %v49 = vld [vmem:[%s0 + $0xd0] sm:$0xff]
  %v50 = vld [vmem:[%s0 + $0xd8] sm:$0xff]
  %v51 = vld [vmem:[%s0 + $0xe0] sm:$0xff]
  %v52 = vld [vmem:[%s0 + $0xe8] sm:$0xff]
  %v53 = vld [vmem:[%s0 + $0xf0] sm:$0xff]
  %v54 = vld [vmem:[%s0 + $0xf8] sm:$0xff]
  %v55 = vld [vmem:[%s1] sm:$0xff]
  %v56 = vld [vmem:[%s1 + $0x8] sm:$0xff]
  %v57 = vld [vmem:[%s1 + $0x10] sm:$0xff]
  %v58 = vld [vmem:[%s1 + $0x18] sm:$0xff]
  %vm59 = vcmask 261120
  %v61 = vsel %vm59, %v23, 0
  %v64 = vsel %vm59, %v24, 0
  %v67 = vsel %vm59, %v25, 0
  %v70 = vsel %vm59, %v26, 0
  %v73 = vsel %vm59, %v27, 0
  %v76 = vsel %vm59, %v28, 0
  %v79 = vsel %vm59, %v29, 0
  %v82 = vsel %vm59, %v30, 0
  %v85 = vsel %vm59, %v31, 0
  %v88 = vsel %vm59, %v32, 0
  %v91 = vsel %vm59, %v33, 0
  %v94 = vsel %vm59, %v34, 0
  %v97 = vsel %vm59, %v35, 0
  %v100 = vsel %vm59, %v36, 0
  %v103 = vsel %vm59, %v37, 0
  %v106 = vsel %vm59, %v38, 0
  %v109 = vsel %vm59, %v39, 0
  %v112 = vsel %vm59, %v40, 0
  %v115 = vsel %vm59, %v41, 0
  %v118 = vsel %vm59, %v42, 0
  %v121 = vsel %vm59, %v43, 0
  %v124 = vsel %vm59, %v44, 0
  %v127 = vsel %vm59, %v45, 0
  %v130 = vsel %vm59, %v46, 0
  %v133 = vsel %vm59, %v47, 0
  %v136 = vsel %vm59, %v48, 0
  %v139 = vsel %vm59, %v49, 0
  %v142 = vsel %vm59, %v50, 0
  %v145 = vsel %vm59, %v51, 0
  %v148 = vsel %vm59, %v52, 0
  %v151 = vsel %vm59, %v53, 0
  %v154 = vsel %vm59, %v54, 0
  %156 = vmatprep.subr.mxu0 0.0
  %157 = vmatpush1.msra.mxu0 0.0
  %158 = vmatprep.subr.mxu0 0.0
  %159 = vmatpush1.msra.mxu0 0.0
  %160 = vmatprep.subr.mxu0 0.0
  %161 = vmatpush1.msra.mxu0 0.0
  %162 = vmatprep.subr.mxu0 0.0
  %163 = vmatpush1.msra.mxu0 0.0
  %164 = vmatprep.subr.mxu0 0.0
  %165 = vmatpush1.msra.mxu0 0.0
  %166 = vmatprep.subr.mxu0 0.0
  %167 = vmatpush1.msra.mxu0 0.0
  %168 = vmatprep.subr.mxu0 0.0
  %169 = vmatpush1.msra.mxu0 0.0
  %170 = vmatprep.subr.mxu0 0.0
  %171 = vmatpush1.msra.mxu0 0.0
  %172 = vmatprep.subr.mxu0 0.0
  %173 = vmatpush1.msra.mxu0 0.0
  %174 = vmatprep.subr.mxu0 0.0
  %175 = vmatpush1.msra.mxu0 0.0
  %176 = vmatprep.subr.mxu0 0.0
  %177 = vmatpush1.msra.mxu0 0.0
  %178 = vmatprep.subr.mxu0 0.0
  %179 = vmatpush1.msra.mxu0 0.0
  %180 = vmatprep.subr.mxu0 0.0
  %181 = vmatpush1.msra.mxu0 %v58
  %182 = vmatprep.subr.mxu0 0.0
  %183 = vmatpush1.msra.mxu0 %v57
  %184 = vmatprep.subr.mxu0 0.0
  %185 = vmatpush1.msra.mxu0 %v56
  %186 = vmatprep.subr.mxu0 0.0
  %187 = vmatpush1.msra.mxu0 %v55
  %188 = vmatprep.subr.mxu0 0.0
  %189 = vmatpush2.msra.mxu0 0.0
  %190 = vmatprep.subr.mxu0 0.0
  %191 = vmatpush2.msra.mxu0 0.0
  %192 = vmatprep.subr.mxu0 0.0
  %193 = vmatpush2.msra.mxu0 0.0
  %194 = vmatprep.subr.mxu0 0.0
  %195 = vmatpush2.msra.mxu0 0.0
  %196 = vmatprep.subr.mxu0 0.0
  %197 = vmatpush2.msra.mxu0 0.0
  %198 = vmatprep.subr.mxu0 0.0
  %199 = vmatpush2.msra.mxu0 0.0
  %200 = vmatprep.subr.mxu0 0.0
  %201 = vmatpush2.msra.mxu0 0.0
  %202 = vmatprep.subr.mxu0 0.0
  %203 = vmatpush2.msra.mxu0 0.0
  %204 = vmatprep.subr.mxu0 0.0
  %205 = vmatpush2.msra.mxu0 0.0
  %206 = vmatprep.subr.mxu0 0.0
  %207 = vmatpush2.msra.mxu0 0.0
  %208 = vmatprep.subr.mxu0 0.0
  %209 = vmatpush2.msra.mxu0 0.0
  %210 = vmatprep.subr.mxu0 0.0
  %211 = vmatpush2.msra.mxu0 0.0
  %212 = vmatprep.subr.mxu0 0.0
  %213 = vmatpush2.msra.mxu0 0.0
  %214 = vmatprep.subr.mxu0 0.0
  %215 = vmatpush2.msra.mxu0 0.0
  %216 = vmatprep.subr.mxu0 0.0
  %217 = vmatpush2.msra.mxu0 0.0
  %218 = vmatprep.subr.mxu0 0.0
  %219 = vmatpush2.msra.mxu0 0.0
  %220 = vmatprep.mubr.f32.mxu0 0.0
  %221 = vmatmul.mubr.f32.gmra.mxu0 %v61
  %v222 = vpop.f32.mrf.mxu0
  %v223 = vadd.f32 0.0, %v222
  %v224 = vpop.f32.mrf.mxu0
  %225 = vmatprep.mubr.f32.mxu0 0.0
  %226 = vmatmul.mubr.f32.gmra.mxu0 %v64
  %v227 = vpop.f32.mrf.mxu0
  %v228 = vadd.f32 0.0, %v227
  %v229 = vpop.f32.mrf.mxu0
  %230 = vmatprep.mubr.f32.mxu0 0.0
  %231 = vmatmul.mubr.f32.gmra.mxu0 %v67
  %v232 = vpop.f32.mrf.mxu0
  %v233 = vadd.f32 0.0, %v232
  %v234 = vpop.f32.mrf.mxu0
  %235 = vmatprep.mubr.f32.mxu0 0.0
  %236 = vmatmul.mubr.f32.gmra.mxu0 %v70
  %v237 = vpop.f32.mrf.mxu0
  %v238 = vadd.f32 0.0, %v237
  %v239 = vpop.f32.mrf.mxu0
  %240 = vmatprep.mubr.f32.mxu0 0.0
  %241 = vmatmul.mubr.f32.gmra.mxu0 %v73
  %v242 = vpop.f32.mrf.mxu0
  %v243 = vadd.f32 0.0, %v242
  %v244 = vpop.f32.mrf.mxu0
  %245 = vmatprep.mubr.f32.mxu0 0.0
  %246 = vmatmul.mubr.f32.gmra.mxu0 %v76
  %v247 = vpop.f32.mrf.mxu0
  %v248 = vadd.f32 0.0, %v247
  %v249 = vpop.f32.mrf.mxu0
  %250 = vmatprep.mubr.f32.mxu0 0.0
  %251 = vmatmul.mubr.f32.gmra.mxu0 %v79
  %v252 = vpop.f32.mrf.mxu0
  %v253 = vadd.f32 0.0, %v252
  %v254 = vpop.f32.mrf.mxu0
  %255 = vmatprep.mubr.f32.mxu0 0.0
  %256 = vmatmul.mubr.f32.gmra.mxu0 %v82
  %v257 = vpop.f32.mrf.mxu0
  %v258 = vadd.f32 0.0, %v257
  %v259 = vpop.f32.mrf.mxu0
  %260 = vmatprep.mubr.f32.mxu0 0.0
  %261 = vmatmul.mubr.f32.gmra.mxu0 %v85
  %v262 = vpop.f32.mrf.mxu0
  %v263 = vadd.f32 0.0, %v262
  %v264 = vpop.f32.mrf.mxu0
  %265 = vmatprep.mubr.f32.mxu0 0.0
  %266 = vmatmul.mubr.f32.gmra.mxu0 %v88
  %v267 = vpop.f32.mrf.mxu0
  %v268 = vadd.f32 0.0, %v267
  %v269 = vpop.f32.mrf.mxu0
  %270 = vmatprep.mubr.f32.mxu0 0.0
  %271 = vmatmul.mubr.f32.gmra.mxu0 %v91
  %v272 = vpop.f32.mrf.mxu0
  %v273 = vadd.f32 0.0, %v272
  %v274 = vpop.f32.mrf.mxu0
  %275 = vmatprep.mubr.f32.mxu0 0.0
  %276 = vmatmul.mubr.f32.gmra.mxu0 %v94
  %v277 = vpop.f32.mrf.mxu0
  %v278 = vadd.f32 0.0, %v277
  %v279 = vpop.f32.mrf.mxu0
  %280 = vmatprep.mubr.f32.mxu0 0.0
  %281 = vmatmul.mubr.f32.gmra.mxu0 %v97
  %v282 = vpop.f32.mrf.mxu0
  %v283 = vadd.f32 0.0, %v282
  %v284 = vpop.f32.mrf.mxu0
  %285 = vmatprep.mubr.f32.mxu0 0.0
  %286 = vmatmul.mubr.f32.gmra.mxu0 %v100
  %v287 = vpop.f32.mrf.mxu0
  %v288 = vadd.f32 0.0, %v287
  %v289 = vpop.f32.mrf.mxu0
  %290 = vmatprep.mubr.f32.mxu0 0.0
  %291 = vmatmul.mubr.f32.gmra.mxu0 %v103
  %v292 = vpop.f32.mrf.mxu0
  %v293 = vadd.f32 0.0, %v292
  %v294 = vpop.f32.mrf.mxu0
  %295 = vmatprep.mubr.f32.mxu0 0.0
  %296 = vmatmul.mubr.f32.gmra.mxu0 %v106
  %v297 = vpop.f32.mrf.mxu0
  %v298 = vadd.f32 0.0, %v297
  %v299 = vpop.f32.mrf.mxu0
  %300 = vmatprep.mubr.f32.mxu0 0.0
  %301 = vmatmul.mubr.f32.gmra.mxu0 %v109
  %v302 = vpop.f32.mrf.mxu0
  %v303 = vadd.f32 0.0, %v302
  %v304 = vpop.f32.mrf.mxu0
  %305 = vmatprep.mubr.f32.mxu0 0.0
  %306 = vmatmul.mubr.f32.gmra.mxu0 %v112
  %v307 = vpop.f32.mrf.mxu0
  %v308 = vadd.f32 0.0, %v307
  %v309 = vpop.f32.mrf.mxu0
  %310 = vmatprep.mubr.f32.mxu0 0.0
  %311 = vmatmul.mubr.f32.gmra.mxu0 %v115
  %v312 = vpop.f32.mrf.mxu0
  %v313 = vadd.f32 0.0, %v312
  %v314 = vpop.f32.mrf.mxu0
  %315 = vmatprep.mubr.f32.mxu0 0.0
  %316 = vmatmul.mubr.f32.gmra.mxu0 %v118
  %v317 = vpop.f32.mrf.mxu0
  %v318 = vadd.f32 0.0, %v317
  %v319 = vpop.f32.mrf.mxu0
  %320 = vmatprep.mubr.f32.mxu0 0.0
  %321 = vmatmul.mubr.f32.gmra.mxu0 %v121
  %v322 = vpop.f32.mrf.mxu0
  %v323 = vadd.f32 0.0, %v322
  %v324 = vpop.f32.mrf.mxu0
  %325 = vmatprep.mubr.f32.mxu0 0.0
  %326 = vmatmul.mubr.f32.gmra.mxu0 %v124
  %v327 = vpop.f32.mrf.mxu0
  %v328 = vadd.f32 0.0, %v327
  %v329 = vpop.f32.mrf.mxu0
  %330 = vmatprep.mubr.f32.mxu0 0.0
  %331 = vmatmul.mubr.f32.gmra.mxu0 %v127
  %v332 = vpop.f32.mrf.mxu0
  %v333 = vadd.f32 0.0, %v332
  %v334 = vpop.f32.mrf.mxu0
  %335 = vmatprep.mubr.f32.mxu0 0.0
  %336 = vmatmul.mubr.f32.gmra.mxu0 %v130
  %v337 = vpop.f32.mrf.mxu0
  %v338 = vadd.f32 0.0, %v337
  %v339 = vpop.f32.mrf.mxu0
  %340 = vmatprep.mubr.f32.mxu0 0.0
  %341 = vmatmul.mubr.f32.gmra.mxu0 %v133
  %v342 = vpop.f32.mrf.mxu0
  %v343 = vadd.f32 0.0, %v342
  %v344 = vpop.f32.mrf.mxu0
  %345 = vmatprep.mubr.f32.mxu0 0.0
  %346 = vmatmul.mubr.f32.gmra.mxu0 %v136
  %v347 = vpop.f32.mrf.mxu0
  %v348 = vadd.f32 0.0, %v347
  %v349 = vpop.f32.mrf.mxu0
  %350 = vmatprep.mubr.f32.mxu0 0.0
  %351 = vmatmul.mubr.f32.gmra.mxu0 %v139
  %v352 = vpop.f32.mrf.mxu0
  %v353 = vadd.f32 0.0, %v352
  %v354 = vpop.f32.mrf.mxu0
  %355 = vmatprep.mubr.f32.mxu0 0.0
  %356 = vmatmul.mubr.f32.gmra.mxu0 %v142
  %v357 = vpop.f32.mrf.mxu0
  %v358 = vadd.f32 0.0, %v357
  %v359 = vpop.f32.mrf.mxu0
  %360 = vmatprep.mubr.f32.mxu0 0.0
  %361 = vmatmul.mubr.f32.gmra.mxu0 %v145
  %v362 = vpop.f32.mrf.mxu0
  %v363 = vadd.f32 0.0, %v362
  %v364 = vpop.f32.mrf.mxu0
  %365 = vmatprep.mubr.f32.mxu0 0.0
  %366 = vmatmul.mubr.f32.gmra.mxu0 %v148
  %v367 = vpop.f32.mrf.mxu0
  %v368 = vadd.f32 0.0, %v367
  %v369 = vpop.f32.mrf.mxu0
  %370 = vmatprep.mubr.f32.mxu0 0.0
  %371 = vmatmul.mubr.f32.gmra.mxu0 %v151
  %v372 = vpop.f32.mrf.mxu0
  %v373 = vadd.f32 0.0, %v372
  %v374 = vpop.f32.mrf.mxu0
  %375 = vmatprep.mubr.f32.mxu0 0.0
  %376 = vmatmul.mubr.f32.gmra.mxu0 %v154
  %v377 = vpop.f32.mrf.mxu0
  %v378 = vadd.f32 0.0, %v377
  %v379 = vpop.f32.mrf.mxu0
  %380 = vdwg.mxu0
  %v381 = vadd.f32 %v223, %v228
  %v382 = vadd.f32 %v381, %v233
  %v383 = vadd.f32 %v382, %v238
  %v384 = vadd.f32 %v383, %v243
  %v385 = vadd.f32 %v384, %v248
  %v386 = vadd.f32 %v385, %v253
  %v387 = vadd.f32 %v386, %v258
  %v388 = vadd.f32 %v387, %v263
  %v389 = vadd.f32 %v388, %v268
  %v390 = vadd.f32 %v389, %v273
  %v391 = vadd.f32 %v390, %v278
  %v392 = vadd.f32 %v391, %v283
  %v393 = vadd.f32 %v392, %v288
  %v394 = vadd.f32 %v393, %v293
  %v395 = vadd.f32 %v394, %v298
  %v396 = vadd.f32 %v395, %v303
  %v397 = vadd.f32 %v396, %v308
  %v398 = vadd.f32 %v397, %v313
  %v399 = vadd.f32 %v398, %v318
  %v400 = vadd.f32 %v399, %v323
  %v401 = vadd.f32 %v400, %v328
  %v402 = vadd.f32 %v401, %v333
  %v403 = vadd.f32 %v402, %v338
  %v404 = vadd.f32 %v403, %v343
  %v405 = vadd.f32 %v404, %v348
  %v406 = vadd.f32 %v405, %v353
  %v407 = vadd.f32 %v406, %v358
  %v408 = vadd.f32 %v407, %v363
  %v409 = vadd.f32 %v408, %v368
  %v410 = vadd.f32 %v409, %v373
  %v411 = vadd.f32 %v410, %v378
  %v412 = vrot.slane %v411, 4
  %v413 = vadd.f32 %v411, %v412
  %v414 = vrot.slane %v413, 2
  %v415 = vadd.f32 %v413, %v414
  %v416 = vrot.slane %v415, 1
  %v417 = vadd.f32 %v415, %v416
  %v418 = vmul.f32 %v223, %v223
  %v419 = vmul.f32 %v228, %v228
  %v420 = vmul.f32 %v233, %v233
  %v421 = vmul.f32 %v238, %v238
  %v422 = vmul.f32 %v243, %v243
  %v423 = vmul.f32 %v248, %v248
  %v424 = vmul.f32 %v253, %v253
  %v425 = vmul.f32 %v258, %v258
  %v426 = vmul.f32 %v263, %v263
  %v427 = vmul.f32 %v268, %v268
  %v428 = vmul.f32 %v273, %v273
  %v429 = vmul.f32 %v278, %v278
  %v430 = vmul.f32 %v283, %v283
  %v431 = vmul.f32 %v288, %v288
  %v432 = vmul.f32 %v293, %v293
  %v433 = vmul.f32 %v298, %v298
  %v434 = vmul.f32 %v303, %v303
  %v435 = vmul.f32 %v308, %v308
  %v436 = vmul.f32 %v313, %v313
  %v437 = vmul.f32 %v318, %v318
  %v438 = vmul.f32 %v323, %v323
  %v439 = vmul.f32 %v328, %v328
  %v440 = vmul.f32 %v333, %v333
  %v441 = vmul.f32 %v338, %v338
  %v442 = vmul.f32 %v343, %v343
  %v443 = vmul.f32 %v348, %v348
  %v444 = vmul.f32 %v353, %v353
  %v445 = vmul.f32 %v358, %v358
  %v446 = vmul.f32 %v363, %v363
  %v447 = vmul.f32 %v368, %v368
  %v448 = vmul.f32 %v373, %v373
  %v449 = vmul.f32 %v378, %v378
  %v450 = vadd.f32 %v418, %v419
  %v451 = vadd.f32 %v450, %v420
  %v452 = vadd.f32 %v451, %v421
  %v453 = vadd.f32 %v452, %v422
  %v454 = vadd.f32 %v453, %v423
  %v455 = vadd.f32 %v454, %v424
  %v456 = vadd.f32 %v455, %v425
  %v457 = vadd.f32 %v456, %v426
  %v458 = vadd.f32 %v457, %v427
  %v459 = vadd.f32 %v458, %v428
  %v460 = vadd.f32 %v459, %v429
  %v461 = vadd.f32 %v460, %v430
  %v462 = vadd.f32 %v461, %v431
  %v463 = vadd.f32 %v462, %v432
  %v464 = vadd.f32 %v463, %v433
  %v465 = vadd.f32 %v464, %v434
  %v466 = vadd.f32 %v465, %v435
  %v467 = vadd.f32 %v466, %v436
  %v468 = vadd.f32 %v467, %v437
  %v469 = vadd.f32 %v468, %v438
  %v470 = vadd.f32 %v469, %v439
  %v471 = vadd.f32 %v470, %v440
  %v472 = vadd.f32 %v471, %v441
  %v473 = vadd.f32 %v472, %v442
  %v474 = vadd.f32 %v473, %v443
  %v475 = vadd.f32 %v474, %v444
  %v476 = vadd.f32 %v475, %v445
  %v477 = vadd.f32 %v476, %v446
  %v478 = vadd.f32 %v477, %v447
  %v479 = vadd.f32 %v478, %v448
  %v480 = vadd.f32 %v479, %v449
  %v481 = vrot.slane %v480, 4
  %v482 = vadd.f32 %v480, %v481
  %v483 = vrot.slane %v482, 2
  %v484 = vadd.f32 %v482, %v483
  %v485 = vrot.slane %v484, 1
  %v486 = vadd.f32 %v484, %v485
  %v487 = vmul.f32 %v417, 0.00390625
  %v488 = vmul.f32 %v486, 0.00390625
  %v489 = vmul.f32 %v487, %v487
  %v490 = vsub.f32 %v488, %v489
  %v491 = vld [vmem:[%s2] sm:$0x1]
  %v492 = vadd.f32 %v490, 1e-05
  %v493 = vrsqrt.pop %v492
  %v494 = vmul.f32 %v491, %v493
  %v495 = vld [vmem:[%s3] sm:$0x1]
  %v496 = vmul.f32 %v487, %v494
  %v497 = vsub.f32 %v495, %v496
  %v499 = vlaneseq
  %v500 = vshrl.u32 %v499, 7
  %v501 = vsub.s32 0, %v500
  %v502 = vrot.slane %v494, %v501
  %v504 = vmul.f32 %v223, %v502
  %v505 = vmul.f32 %v228, %v502
  %v506 = vmul.f32 %v233, %v502
  %v507 = vmul.f32 %v238, %v502
  %v508 = vmul.f32 %v243, %v502
  %v509 = vmul.f32 %v248, %v502
  %v510 = vmul.f32 %v253, %v502
  %v511 = vmul.f32 %v258, %v502
  %v512 = vmul.f32 %v263, %v502
  %v513 = vmul.f32 %v268, %v502
  %v514 = vmul.f32 %v273, %v502
  %v515 = vmul.f32 %v278, %v502
  %v516 = vmul.f32 %v283, %v502
  %v517 = vmul.f32 %v288, %v502
  %v518 = vmul.f32 %v293, %v502
  %v519 = vmul.f32 %v298, %v502
  %v520 = vmul.f32 %v303, %v502
  %v521 = vmul.f32 %v308, %v502
  %v522 = vmul.f32 %v313, %v502
  %v523 = vmul.f32 %v318, %v502
  %v524 = vmul.f32 %v323, %v502
  %v525 = vmul.f32 %v328, %v502
  %v526 = vmul.f32 %v333, %v502
  %v527 = vmul.f32 %v338, %v502
  %v528 = vmul.f32 %v343, %v502
  %v529 = vmul.f32 %v348, %v502
  %v530 = vmul.f32 %v353, %v502
  %v531 = vmul.f32 %v358, %v502
  %v532 = vmul.f32 %v363, %v502
  %v533 = vmul.f32 %v368, %v502
  %v534 = vmul.f32 %v373, %v502
  %v535 = vmul.f32 %v378, %v502
  %v537 = vlaneseq
  %v538 = vshrl.u32 %v537, 7
  %v539 = vsub.s32 0, %v538
  %v540 = vrot.slane %v497, %v539
  %v542 = vadd.f32 %v504, %v540
  %v543 = vadd.f32 %v505, %v540
  %v544 = vadd.f32 %v506, %v540
  %v545 = vadd.f32 %v507, %v540
  %v546 = vadd.f32 %v508, %v540
  %v547 = vadd.f32 %v509, %v540
  %v548 = vadd.f32 %v510, %v540
  %v549 = vadd.f32 %v511, %v540
  %v550 = vadd.f32 %v512, %v540
  %v551 = vadd.f32 %v513, %v540
  %v552 = vadd.f32 %v514, %v540
  %v553 = vadd.f32 %v515, %v540
  %v554 = vadd.f32 %v516, %v540
  %v555 = vadd.f32 %v517, %v540
  %v556 = vadd.f32 %v518, %v540
  %v557 = vadd.f32 %v519, %v540
  %v558 = vadd.f32 %v520, %v540
  %v559 = vadd.f32 %v521, %v540
  %v560 = vadd.f32 %v522, %v540
  %v561 = vadd.f32 %v523, %v540
  %v562 = vadd.f32 %v524, %v540
  %v563 = vadd.f32 %v525, %v540
  %v564 = vadd.f32 %v526, %v540
  %v565 = vadd.f32 %v527, %v540
  %v566 = vadd.f32 %v528, %v540
  %v567 = vadd.f32 %v529, %v540
  %v568 = vadd.f32 %v530, %v540
  %v569 = vadd.f32 %v531, %v540
  %v570 = vadd.f32 %v532, %v540
  %v571 = vadd.f32 %v533, %v540
  %v572 = vadd.f32 %v534, %v540
  %v573 = vadd.f32 %v535, %v540
  %v574 = vmax.f32 %v542, 0.0
  %v575 = vmax.f32 %v543, 0.0
  %v576 = vmax.f32 %v544, 0.0
  %v577 = vmax.f32 %v545, 0.0
  %v578 = vmax.f32 %v546, 0.0
  %v579 = vmax.f32 %v547, 0.0
  %v580 = vmax.f32 %v548, 0.0
  %v581 = vmax.f32 %v549, 0.0
  %v582 = vmax.f32 %v550, 0.0
  %v583 = vmax.f32 %v551, 0.0
  %v584 = vmax.f32 %v552, 0.0
  %v585 = vmax.f32 %v553, 0.0
  %v586 = vmax.f32 %v554, 0.0
  %v587 = vmax.f32 %v555, 0.0
  %v588 = vmax.f32 %v556, 0.0
  %v589 = vmax.f32 %v557, 0.0
  %v590 = vmax.f32 %v558, 0.0
  %v591 = vmax.f32 %v559, 0.0
  %v592 = vmax.f32 %v560, 0.0
  %v593 = vmax.f32 %v561, 0.0
  %v594 = vmax.f32 %v562, 0.0
  %v595 = vmax.f32 %v563, 0.0
  %v596 = vmax.f32 %v564, 0.0
  %v597 = vmax.f32 %v565, 0.0
  %v598 = vmax.f32 %v566, 0.0
  %v599 = vmax.f32 %v567, 0.0
  %v600 = vmax.f32 %v568, 0.0
  %v601 = vmax.f32 %v569, 0.0
  %v602 = vmax.f32 %v570, 0.0
  %v603 = vmax.f32 %v571, 0.0
  %v604 = vmax.f32 %v572, 0.0
  %v605 = vmax.f32 %v573, 0.0
  %v606 = vld [vmem:[%s4] sm:$0xff]
  %v607 = vld [vmem:[%s4 + $0x8] sm:$0xff]
  %v608 = vld [vmem:[%s4 + $0x10] sm:$0xff]
  %v609 = vld [vmem:[%s4 + $0x18] sm:$0xff]
  %v610 = vld [vmem:[%s4 + $0x20] sm:$0xff]
  %v611 = vld [vmem:[%s4 + $0x28] sm:$0xff]
  %v612 = vld [vmem:[%s4 + $0x30] sm:$0xff]
  %v613 = vld [vmem:[%s4 + $0x38] sm:$0xff]
  %v614 = vld [vmem:[%s4 + $0x40] sm:$0xff]
  %v615 = vld [vmem:[%s4 + $0x48] sm:$0xff]
  %v616 = vld [vmem:[%s4 + $0x50] sm:$0xff]
  %v617 = vld [vmem:[%s4 + $0x58] sm:$0xff]
  %v618 = vld [vmem:[%s4 + $0x60] sm:$0xff]
  %v619 = vld [vmem:[%s4 + $0x68] sm:$0xff]
  %v620 = vld [vmem:[%s4 + $0x70] sm:$0xff]
  %v621 = vld [vmem:[%s4 + $0x78] sm:$0xff]
  %v622 = vld [vmem:[%s5] sm:$0x1]
  %v624 = vlaneseq
  %v625 = vshrl.u32 %v624, 7
  %v626 = vsub.s32 0, %v625
  %v627 = vrot.slane %v622, %v626
  %629 = vmatprep.subr.mxu0 0.0
  %630 = vmatpush1.msra.mxu0 %v621
  %631 = vmatprep.subr.mxu0 0.0
  %632 = vmatpush1.msra.mxu0 %v620
  %633 = vmatprep.subr.mxu0 0.0
  %634 = vmatpush1.msra.mxu0 %v619
  %635 = vmatprep.subr.mxu0 0.0
  %636 = vmatpush1.msra.mxu0 %v618
  %637 = vmatprep.subr.mxu0 0.0
  %638 = vmatpush1.msra.mxu0 %v617
  %639 = vmatprep.subr.mxu0 0.0
  %640 = vmatpush1.msra.mxu0 %v616
  %641 = vmatprep.subr.mxu0 0.0
  %642 = vmatpush1.msra.mxu0 %v615
  %643 = vmatprep.subr.mxu0 0.0
  %644 = vmatpush1.msra.mxu0 %v614
  %645 = vmatprep.subr.mxu0 0.0
  %646 = vmatpush1.msra.mxu0 %v613
  %647 = vmatprep.subr.mxu0 0.0
  %648 = vmatpush1.msra.mxu0 %v612
  %649 = vmatprep.subr.mxu0 0.0
  %650 = vmatpush1.msra.mxu0 %v611
  %651 = vmatprep.subr.mxu0 0.0
  %652 = vmatpush1.msra.mxu0 %v610
  %653 = vmatprep.subr.mxu0 0.0
  %654 = vmatpush1.msra.mxu0 %v609
  %655 = vmatprep.subr.mxu0 0.0
  %656 = vmatpush1.msra.mxu0 %v608
  %657 = vmatprep.subr.mxu0 0.0
  %658 = vmatpush1.msra.mxu0 %v607
  %659 = vmatprep.subr.mxu0 0.0
  %660 = vmatpush1.msra.mxu0 %v606
  %661 = vmatprep.subr.mxu0 0.0
  %662 = vmatpush2.msra.mxu0 0.0
  %663 = vmatprep.subr.mxu0 0.0
  %664 = vmatpush2.msra.mxu0 0.0
  %665 = vmatprep.subr.mxu0 0.0
  %666 = vmatpush2.msra.mxu0 0.0
  %667 = vmatprep.subr.mxu0 0.0
  %668 = vmatpush2.msra.mxu0 0.0
  %669 = vmatprep.subr.mxu0 0.0
  %670 = vmatpush2.msra.mxu0 0.0
  %671 = vmatprep.subr.mxu0 0.0
  %672 = vmatpush2.msra.mxu0 0.0
  %673 = vmatprep.subr.mxu0 0.0
  %674 = vmatpush2.msra.mxu0 0.0
  %675 = vmatprep.subr.mxu0 0.0
  %676 = vmatpush2.msra.mxu0 0.0
  %677 = vmatprep.subr.mxu0 0.0
  %678 = vmatpush2.msra.mxu0 0.0
  %679 = vmatprep.subr.mxu0 0.0
  %680 = vmatpush2.msra.mxu0 0.0
  %681 = vmatprep.subr.mxu0 0.0
  %682 = vmatpush2.msra.mxu0 0.0
  %683 = vmatprep.subr.mxu0 0.0
  %684 = vmatpush2.msra.mxu0 0.0
  %685 = vmatprep.subr.mxu0 0.0
  %686 = vmatpush2.msra.mxu0 0.0
  %687 = vmatprep.subr.mxu0 0.0
  %688 = vmatpush2.msra.mxu0 0.0
  %689 = vmatprep.subr.mxu0 0.0
  %690 = vmatpush2.msra.mxu0 0.0
  %691 = vmatprep.subr.mxu0 0.0
  %692 = vmatpush2.msra.mxu0 0.0
  %693 = vmatprep.mubr.f32.mxu0 0.0
  %694 = vmatmul.mubr.f32.gmra.mxu0 %v574
  %v695 = vpop.f32.mrf.mxu0
  %v696 = vadd.f32 %v627, %v695
  %v697 = vpop.f32.mrf.mxu0
  %698 = vmatprep.mubr.f32.mxu0 0.0
  %699 = vmatmul.mubr.f32.gmra.mxu0 %v575
  %v700 = vpop.f32.mrf.mxu0
  %v701 = vadd.f32 %v627, %v700
  %v702 = vpop.f32.mrf.mxu0
  %703 = vmatprep.mubr.f32.mxu0 0.0
  %704 = vmatmul.mubr.f32.gmra.mxu0 %v576
  %v705 = vpop.f32.mrf.mxu0
  %v706 = vadd.f32 %v627, %v705
  %v707 = vpop.f32.mrf.mxu0
  %708 = vmatprep.mubr.f32.mxu0 0.0
  %709 = vmatmul.mubr.f32.gmra.mxu0 %v577
  %v710 = vpop.f32.mrf.mxu0
  %v711 = vadd.f32 %v627, %v710
  %v712 = vpop.f32.mrf.mxu0
  %713 = vmatprep.mubr.f32.mxu0 0.0
  %714 = vmatmul.mubr.f32.gmra.mxu0 %v578
  %v715 = vpop.f32.mrf.mxu0
  %v716 = vadd.f32 %v627, %v715
  %v717 = vpop.f32.mrf.mxu0
  %718 = vmatprep.mubr.f32.mxu0 0.0
  %719 = vmatmul.mubr.f32.gmra.mxu0 %v579
  %v720 = vpop.f32.mrf.mxu0
  %v721 = vadd.f32 %v627, %v720
  %v722 = vpop.f32.mrf.mxu0
  %723 = vmatprep.mubr.f32.mxu0 0.0
  %724 = vmatmul.mubr.f32.gmra.mxu0 %v580
  %v725 = vpop.f32.mrf.mxu0
  %v726 = vadd.f32 %v627, %v725
  %v727 = vpop.f32.mrf.mxu0
  %728 = vmatprep.mubr.f32.mxu0 0.0
  %729 = vmatmul.mubr.f32.gmra.mxu0 %v581
  %v730 = vpop.f32.mrf.mxu0
  %v731 = vadd.f32 %v627, %v730
  %v732 = vpop.f32.mrf.mxu0
  %733 = vmatprep.mubr.f32.mxu0 0.0
  %734 = vmatmul.mubr.f32.gmra.mxu0 %v582
  %v735 = vpop.f32.mrf.mxu0
  %v736 = vadd.f32 %v627, %v735
  %v737 = vpop.f32.mrf.mxu0
  %738 = vmatprep.mubr.f32.mxu0 0.0
  %739 = vmatmul.mubr.f32.gmra.mxu0 %v583
  %v740 = vpop.f32.mrf.mxu0
  %v741 = vadd.f32 %v627, %v740
  %v742 = vpop.f32.mrf.mxu0
  %743 = vmatprep.mubr.f32.mxu0 0.0
  %744 = vmatmul.mubr.f32.gmra.mxu0 %v584
  %v745 = vpop.f32.mrf.mxu0
  %v746 = vadd.f32 %v627, %v745
  %v747 = vpop.f32.mrf.mxu0
  %748 = vmatprep.mubr.f32.mxu0 0.0
  %749 = vmatmul.mubr.f32.gmra.mxu0 %v585
  %v750 = vpop.f32.mrf.mxu0
  %v751 = vadd.f32 %v627, %v750
  %v752 = vpop.f32.mrf.mxu0
  %753 = vmatprep.mubr.f32.mxu0 0.0
  %754 = vmatmul.mubr.f32.gmra.mxu0 %v586
  %v755 = vpop.f32.mrf.mxu0
  %v756 = vadd.f32 %v627, %v755
  %v757 = vpop.f32.mrf.mxu0
  %758 = vmatprep.mubr.f32.mxu0 0.0
  %759 = vmatmul.mubr.f32.gmra.mxu0 %v587
  %v760 = vpop.f32.mrf.mxu0
  %v761 = vadd.f32 %v627, %v760
  %v762 = vpop.f32.mrf.mxu0
  %763 = vmatprep.mubr.f32.mxu0 0.0
  %764 = vmatmul.mubr.f32.gmra.mxu0 %v588
  %v765 = vpop.f32.mrf.mxu0
  %v766 = vadd.f32 %v627, %v765
  %v767 = vpop.f32.mrf.mxu0
  %768 = vmatprep.mubr.f32.mxu0 0.0
  %769 = vmatmul.mubr.f32.gmra.mxu0 %v589
  %v770 = vpop.f32.mrf.mxu0
  %v771 = vadd.f32 %v627, %v770
  %v772 = vpop.f32.mrf.mxu0
  %773 = vmatprep.mubr.f32.mxu0 0.0
  %774 = vmatmul.mubr.f32.gmra.mxu0 %v590
  %v775 = vpop.f32.mrf.mxu0
  %v776 = vadd.f32 %v627, %v775
  %v777 = vpop.f32.mrf.mxu0
  %778 = vmatprep.mubr.f32.mxu0 0.0
  %779 = vmatmul.mubr.f32.gmra.mxu0 %v591
  %v780 = vpop.f32.mrf.mxu0
  %v781 = vadd.f32 %v627, %v780
  %v782 = vpop.f32.mrf.mxu0
  %783 = vmatprep.mubr.f32.mxu0 0.0
  %784 = vmatmul.mubr.f32.gmra.mxu0 %v592
  %v785 = vpop.f32.mrf.mxu0
  %v786 = vadd.f32 %v627, %v785
  %v787 = vpop.f32.mrf.mxu0
  %788 = vmatprep.mubr.f32.mxu0 0.0
  %789 = vmatmul.mubr.f32.gmra.mxu0 %v593
  %v790 = vpop.f32.mrf.mxu0
  %v791 = vadd.f32 %v627, %v790
  %v792 = vpop.f32.mrf.mxu0
  %793 = vmatprep.mubr.f32.mxu0 0.0
  %794 = vmatmul.mubr.f32.gmra.mxu0 %v594
  %v795 = vpop.f32.mrf.mxu0
  %v796 = vadd.f32 %v627, %v795
  %v797 = vpop.f32.mrf.mxu0
  %798 = vmatprep.mubr.f32.mxu0 0.0
  %799 = vmatmul.mubr.f32.gmra.mxu0 %v595
  %v800 = vpop.f32.mrf.mxu0
  %v801 = vadd.f32 %v627, %v800
  %v802 = vpop.f32.mrf.mxu0
  %803 = vmatprep.mubr.f32.mxu0 0.0
  %804 = vmatmul.mubr.f32.gmra.mxu0 %v596
  %v805 = vpop.f32.mrf.mxu0
  %v806 = vadd.f32 %v627, %v805
  %v807 = vpop.f32.mrf.mxu0
  %808 = vmatprep.mubr.f32.mxu0 0.0
  %809 = vmatmul.mubr.f32.gmra.mxu0 %v597
  %v810 = vpop.f32.mrf.mxu0
  %v811 = vadd.f32 %v627, %v810
  %v812 = vpop.f32.mrf.mxu0
  %813 = vmatprep.mubr.f32.mxu0 0.0
  %814 = vmatmul.mubr.f32.gmra.mxu0 %v598
  %v815 = vpop.f32.mrf.mxu0
  %v816 = vadd.f32 %v627, %v815
  %v817 = vpop.f32.mrf.mxu0
  %818 = vmatprep.mubr.f32.mxu0 0.0
  %819 = vmatmul.mubr.f32.gmra.mxu0 %v599
  %v820 = vpop.f32.mrf.mxu0
  %v821 = vadd.f32 %v627, %v820
  %v822 = vpop.f32.mrf.mxu0
  %823 = vmatprep.mubr.f32.mxu0 0.0
  %824 = vmatmul.mubr.f32.gmra.mxu0 %v600
  %v825 = vpop.f32.mrf.mxu0
  %v826 = vadd.f32 %v627, %v825
  %v827 = vpop.f32.mrf.mxu0
  %828 = vmatprep.mubr.f32.mxu0 0.0
  %829 = vmatmul.mubr.f32.gmra.mxu0 %v601
  %v830 = vpop.f32.mrf.mxu0
  %v831 = vadd.f32 %v627, %v830
  %v832 = vpop.f32.mrf.mxu0
  %833 = vmatprep.mubr.f32.mxu0 0.0
  %834 = vmatmul.mubr.f32.gmra.mxu0 %v602
  %v835 = vpop.f32.mrf.mxu0
  %v836 = vadd.f32 %v627, %v835
  %v837 = vpop.f32.mrf.mxu0
  %838 = vmatprep.mubr.f32.mxu0 0.0
  %839 = vmatmul.mubr.f32.gmra.mxu0 %v603
  %v840 = vpop.f32.mrf.mxu0
  %v841 = vadd.f32 %v627, %v840
  %v842 = vpop.f32.mrf.mxu0
  %843 = vmatprep.mubr.f32.mxu0 0.0
  %844 = vmatmul.mubr.f32.gmra.mxu0 %v604
  %v845 = vpop.f32.mrf.mxu0
  %v846 = vadd.f32 %v627, %v845
  %v847 = vpop.f32.mrf.mxu0
  %848 = vmatprep.mubr.f32.mxu0 0.0
  %849 = vmatmul.mubr.f32.gmra.mxu0 %v605
  %v850 = vpop.f32.mrf.mxu0
  %v851 = vadd.f32 %v627, %v850
  %v852 = vpop.f32.mrf.mxu0
  %853 = vdwg.mxu0
  %vm854 = vcmask 130048
  %855 = vst.msk [vmem:[%s6] sm:$0xff] %vm854, %v696
  %856 = vst.msk [vmem:[%s6 + $0x8] sm:$0xff] %vm854, %v701
  %857 = vst.msk [vmem:[%s6 + $0x10] sm:$0xff] %vm854, %v706
  %858 = vst.msk [vmem:[%s6 + $0x18] sm:$0xff] %vm854, %v711
  %859 = vst.msk [vmem:[%s6 + $0x20] sm:$0xff] %vm854, %v716
  %860 = vst.msk [vmem:[%s6 + $0x28] sm:$0xff] %vm854, %v721
  %861 = vst.msk [vmem:[%s6 + $0x30] sm:$0xff] %vm854, %v726
  %862 = vst.msk [vmem:[%s6 + $0x38] sm:$0xff] %vm854, %v731
  %863 = vst.msk [vmem:[%s6 + $0x40] sm:$0xff] %vm854, %v736
  %864 = vst.msk [vmem:[%s6 + $0x48] sm:$0xff] %vm854, %v741
  %865 = vst.msk [vmem:[%s6 + $0x50] sm:$0xff] %vm854, %v746
  %866 = vst.msk [vmem:[%s6 + $0x58] sm:$0xff] %vm854, %v751
  %867 = vst.msk [vmem:[%s6 + $0x60] sm:$0xff] %vm854, %v756
  %868 = vst.msk [vmem:[%s6 + $0x68] sm:$0xff] %vm854, %v761
  %869 = vst.msk [vmem:[%s6 + $0x70] sm:$0xff] %vm854, %v766
  %870 = vst.msk [vmem:[%s6 + $0x78] sm:$0xff] %vm854, %v771
  %871 = vst.msk [vmem:[%s6 + $0x80] sm:$0xff] %vm854, %v776
  %872 = vst.msk [vmem:[%s6 + $0x88] sm:$0xff] %vm854, %v781
  %873 = vst.msk [vmem:[%s6 + $0x90] sm:$0xff] %vm854, %v786
  %874 = vst.msk [vmem:[%s6 + $0x98] sm:$0xff] %vm854, %v791
  %875 = vst.msk [vmem:[%s6 + $0xa0] sm:$0xff] %vm854, %v796
  %876 = vst.msk [vmem:[%s6 + $0xa8] sm:$0xff] %vm854, %v801
  %877 = vst.msk [vmem:[%s6 + $0xb0] sm:$0xff] %vm854, %v806
  %878 = vst.msk [vmem:[%s6 + $0xb8] sm:$0xff] %vm854, %v811
  %879 = vst.msk [vmem:[%s6 + $0xc0] sm:$0xff] %vm854, %v816
  %880 = vst.msk [vmem:[%s6 + $0xc8] sm:$0xff] %vm854, %v821
  %881 = vst.msk [vmem:[%s6 + $0xd0] sm:$0xff] %vm854, %v826
  %882 = vst.msk [vmem:[%s6 + $0xd8] sm:$0xff] %vm854, %v831
  %883 = vst.msk [vmem:[%s6 + $0xe0] sm:$0xff] %vm854, %v836
  %884 = vst.msk [vmem:[%s6 + $0xe8] sm:$0xff] %vm854, %v841
  %885 = vst.msk [vmem:[%s6 + $0xf0] sm:$0xff] %vm854, %v846
  %886 = vst.msk [vmem:[%s6 + $0xf8] sm:$0xff] %vm854, %v851
  // Predicated region
  $region26: #{tpu_custom_call.1} parent=0 // pred_check
    _
  $region27: #{tpu_custom_call.1} parent=0 // pred_check_branch
    %888 = sbr.rel (0) target = $region29
  $region28: #{tpu_custom_call.1} parent=0 // pred_region
    _
  $region29: #{tpu_custom_call.1} parent=0 // pred_fallthru
    _
  // Predicated region
  $region30: #{tpu_custom_call.1} parent=0 // pred_check
    _
  $region31: #{tpu_custom_call.1} parent=0 // pred_check_branch
    %890 = sbr.rel (0) target = $region33
  $region32: #{tpu_custom_call.1} parent=0 // pred_region
    _
  $region33: #{tpu_custom_call.1} parent=0 // pred_fallthru
    _

</llo_original>
